<compile_context>
chip_gen: v5e
topology: v5e:2x2
jax: 0.10.0
libtpu: 0.0.40
codegen_flags: <defaults>
</compile_context>

<pallas_src>
import functools

import jax
import jax.numpy as jnp
from jax.experimental import pallas as pl
from jax.experimental.pallas import tpu as pltpu


# ----------------------------------------------------------------------------
# comb_no_void pattern table (void_let_serve=True); class id == row index.
# ----------------------------------------------------------------------------
_PATTERNS_NO_VOID = (
    (1, 0, 0, 0, 0, 0, 0, 0, 1),  # 0
    (1, 0, 1, 0, 0, 0, 0, 0, 1),  # 1
    (1, 0, 1, 0, 1, 0, 0, 0, 1),  # 2
    (1, 0, 1, 0, 0, 1, 0, 0, 1),  # 3
    (1, 0, 0, 0, 0, 0, 1, 0, 1),  # 4
    (1, 0, 0, 0, 0, 0, 0, 1, 0),  # 5
    (1, 0, 1, 0, 0, 0, 0, 1, 0),  # 6
    (1, 0, 1, 0, 1, 0, 0, 1, 0),  # 7
    (1, 0, 1, 0, 0, 1, 0, 1, 0),  # 8
    (1, 0, 0, 0, 0, 0, 1, 1, 0),  # 9
    (0, 1, 0, 0, 0, 0, 0, 0, 1),  # 10
    (0, 1, 1, 0, 0, 0, 0, 0, 1),  # 11
    (0, 1, 1, 0, 1, 0, 0, 0, 1),  # 12
    (0, 1, 1, 0, 0, 1, 0, 0, 1),  # 13
    (0, 1, 0, 0, 0, 0, 1, 0, 1),  # 14
    (0, 1, 0, 0, 0, 0, 0, 1, 0),  # 15
    (0, 1, 1, 0, 0, 0, 0, 1, 0),  # 16
    (0, 1, 1, 0, 1, 0, 0, 1, 0),  # 17
    (0, 1, 1, 0, 0, 1, 0, 1, 0),  # 18
    (0, 1, 0, 0, 0, 0, 1, 1, 0),  # 19
)
NUM_COMB_NO_VOID = len(_PATTERNS_NO_VOID)  # 20

# bit-packed code of each pattern (LSB = element 0)
_PATTERN_CODES = tuple(sum(b << k for k, b in enumerate(p)) for p in _PATTERNS_NO_VOID)


# ----------------------------------------------------------------------------
# Jitted label adaptation (mirrors adapt_2_no_void / comb_no_void)
# ----------------------------------------------------------------------------
def _adapt_2_no_void(y):
    """y: (B, S, 9) binary -> (y_stroke f32 (B,S), y_comb i32 (B,S))."""
    y = jnp.asarray(y, jnp.int32)
    y_stroke = (jnp.sum(y, axis=-1) > 0).astype(jnp.float32)        # (B, S)
    powers = jnp.left_shift(jnp.int32(1), jnp.arange(9, dtype=jnp.int32))
    code = jnp.sum(y * powers, axis=-1)                             # (B, S)
    codes = jnp.asarray(_PATTERN_CODES, jnp.int32)                  # (20,)
    match = code[..., None] == codes                                # (B, S, 20)
    # torch's comb_no_void falls back to class 0 for unmatched sequences;
    # argmax over an all-False row is already 0, so plain argmax matches it.
    y_comb = jnp.argmax(match, axis=-1).astype(jnp.int32)           # (B, S)
    return y_stroke, y_comb


# ----------------------------------------------------------------------------
# Pallas kernel: fused BCE + gathered CCE + reduction -> SMEM scalar
# ----------------------------------------------------------------------------
def _make_loss2_kernel(w_0, w_1, n_elems):
    w0 = float(w_0)
    w1 = float(w_1)
    inv_denom = 1.0 / float(n_elems)

    def kernel(meta_ref, q_ref, out_ref):
        meta = meta_ref[...]                       # (N, 3): [ys, ps, y_comb]
        q = q_ref[...]                             # (N, C) predicted class probs
        ys = meta[:, 0:1]                          # (N, 1) stroke label in {0, 1}
        ps = meta[:, 1:2]                          # (N, 1) predicted stroke prob
        yc = meta[:, 2:3].astype(jnp.int32)        # (N, 1) class id

        # Weighted BCE fused to one log per element (exact for ys in {0,1}).
        p_t = ys * ps + (1.0 - ys) * (1.0 - ps)    # prob of the true branch
        w = ys * w1 + (1.0 - ys) * w0
        bce = -w * jnp.log(p_t)                    # (N, 1)

        # CCE: gather q[class] with a lane-iota mask, then a single log.
        lane = jax.lax.broadcasted_iota(jnp.int32, q.shape, 1)       # (N, C)
        p_cls = jnp.sum(jnp.where(lane == yc, q, 0.0),
                        axis=-1, keepdims=True)                      # (N, 1)
        cce = -jnp.log(p_cls)                                        # (N, 1)

        out_ref[0, 0] = jnp.sum(bce + ys * cce) * inv_denom

    return kernel


# ----------------------------------------------------------------------------
# Public entry point (single jitted call: adaptation + pallas kernel)
# ----------------------------------------------------------------------------
@functools.partial(jax.jit, static_argnames=("w_0", "w_1"))
def loss_2_pallas(y_pred_stroke, y_pred_comb, y, w_0=0.51, w_1=19.05):
    """Pallas implementation of Loss_2.forward (void_let_serve=True).

    y_pred_stroke: (B, S, 1) f32 probabilities
    y_pred_comb:   (B, S, C) f32 probabilities (C = 20)
    y:             (B, S, 9) binary target sequences
    returns:       shape-(1,) f32 loss (same as the torch module)
    """
    B, S, C = y_pred_comb.shape
    N = B * S

    y_stroke, y_comb = _adapt_2_no_void(y)
    meta = jnp.stack(
        [
            y_stroke.reshape(N),
            jnp.asarray(y_pred_stroke, jnp.float32).reshape(N),
            y_comb.astype(jnp.float32).reshape(N),
        ],
        axis=-1,
    )                                                       # (N, 3) f32
    q = jnp.asarray(y_pred_comb, jnp.float32).reshape(N, C)  # (N, C) f32

    out = pl.pallas_call(
        _make_loss2_kernel(w_0, w_1, N),
        out_shape=jax.ShapeDtypeStruct((1, 1), jnp.float32),
        in_specs=[
            pl.BlockSpec(memory_space=pltpu.MemorySpace.VMEM),
            pl.BlockSpec(memory_space=pltpu.MemorySpace.VMEM),
        ],
        out_specs=pl.BlockSpec(memory_space=pltpu.MemorySpace.SMEM),
    )(meta, q)
    return out.reshape(1)


# ----------------------------------------------------------------------------
# Pure-JAX reference (sanity check)
# ----------------------------------------------------------------------------
def loss_2_ref(y_pred_stroke, y_pred_comb, y, w_0=0.51, w_1=19.05):
    B, S, C = y_pred_comb.shape
    y_stroke, y_comb = _adapt_2_no_void(y)
    ps = jnp.asarray(y_pred_stroke, jnp.float32).reshape(B, S)
    q = jnp.asarray(y_pred_comb, jnp.float32)
    bce = -(w_1 * y_stroke * jnp.log(ps)
            + w_0 * (1.0 - y_stroke) * jnp.log(1.0 - ps))
    cce = -jnp.log(jnp.take_along_axis(q, y_comb[..., None], axis=-1))[..., 0]
    return (jnp.sum(bce + y_stroke * cce) / (B * S)).reshape(1)


if __name__ == "__main__":
    B, S, C = 2, 8, NUM_COMB_NO_VOID
    key = jax.random.PRNGKey(0)
    k1, k2, k3 = jax.random.split(key, 3)

    # Target sequences: one of the 20 valid patterns or the all-zero
    # ("no stroke") sequence, chosen deterministically.
    choice = jax.random.randint(k1, (B, S), 0, NUM_COMB_NO_VOID + 1)
    patterns_ext = jnp.concatenate(
        [jnp.asarray(_PATTERNS_NO_VOID, jnp.int32),
         jnp.zeros((1, 9), jnp.int32)],
        axis=0,
    )
    y = patterns_ext[choice]  # (B, S, 9)

    # Predicted stroke probability in (0, 1) and predicted class distribution.
    y_pred_stroke = jax.random.uniform(
        k2, (B, S, 1), minval=0.05, maxval=0.95
    ).astype(jnp.float32)
    y_pred_comb = jax.nn.softmax(
        jax.random.normal(k3, (B, S, C), dtype=jnp.float32), axis=-1
    )

    out = jax.block_until_ready(loss_2_pallas(y_pred_stroke, y_pred_comb, y))
    ref = jax.block_until_ready(loss_2_ref(y_pred_stroke, y_pred_comb, y))

    assert out.shape == (1,)
    assert bool(jnp.allclose(out, ref, rtol=1e-5, atol=1e-5)), (out, ref)
    print("KERNEL_OK")
</pallas_src>

<mosaic_0001>
module attributes {stable_mosaic.version = 11 : i64} {
  func.func @kernel(%arg0: memref<16x3xf32, #tpu.memory_space<vmem>>, %arg1: memref<16x20xf32, #tpu.memory_space<vmem>>, %arg2: memref<1x1xf32, #tpu.memory_space<smem>>) attributes {dimension_semantics = [], scalar_prefetch = 0 : i64, scratch_operands = 0 : i64, tpu.core_type = #tpu.core_type<tc>} {
    %c0 = arith.constant 0 : index
    %c0_0 = arith.constant 0 : index
    %0 = vector.load %arg0[%c0, %c0_0] : memref<16x3xf32, #tpu.memory_space<vmem>>, vector<16x3xf32>
    %c0_1 = arith.constant 0 : index
    %c0_2 = arith.constant 0 : index
    %1 = vector.load %arg1[%c0_1, %c0_2] : memref<16x20xf32, #tpu.memory_space<vmem>>, vector<16x20xf32>
    %2 = vector.extract_strided_slice %0 {offsets = [0, 0], sizes = [16, 1], strides = [1, 1]} : vector<16x3xf32> to vector<16x1xf32>
    %3 = vector.extract_strided_slice %0 {offsets = [0, 1], sizes = [16, 1], strides = [1, 1]} : vector<16x3xf32> to vector<16x1xf32>
    %4 = vector.extract_strided_slice %0 {offsets = [0, 2], sizes = [16, 1], strides = [1, 1]} : vector<16x3xf32> to vector<16x1xf32>
    %5 = arith.fptosi %4 : vector<16x1xf32> to vector<16x1xi32>
    %6 = arith.mulf %2, %3 : vector<16x1xf32>
    %cst = arith.constant 1.000000e+00 : f32
    %7 = vector.broadcast %cst : f32 to vector<16x1xf32>
    %8 = arith.subf %7, %2 : vector<16x1xf32>
    %cst_3 = arith.constant 1.000000e+00 : f32
    %9 = vector.broadcast %cst_3 : f32 to vector<16x1xf32>
    %10 = arith.subf %9, %3 : vector<16x1xf32>
    %11 = arith.mulf %8, %10 : vector<16x1xf32>
    %12 = arith.addf %6, %11 : vector<16x1xf32>
    %cst_4 = arith.constant 1.905000e+01 : f32
    %13 = vector.broadcast %cst_4 : f32 to vector<16x1xf32>
    %14 = arith.mulf %2, %13 : vector<16x1xf32>
    %cst_5 = arith.constant 1.000000e+00 : f32
    %15 = vector.broadcast %cst_5 : f32 to vector<16x1xf32>
    %16 = arith.subf %15, %2 : vector<16x1xf32>
    %cst_6 = arith.constant 5.100000e-01 : f32
    %17 = vector.broadcast %cst_6 : f32 to vector<16x1xf32>
    %18 = arith.mulf %16, %17 : vector<16x1xf32>
    %19 = arith.addf %14, %18 : vector<16x1xf32>
    %cst_7 = arith.constant 0.000000e+00 : f32
    %20 = vector.broadcast %cst_7 : f32 to vector<16x1xf32>
    %21 = arith.subf %20, %19 : vector<16x1xf32>
    %22 = math.log %12 : vector<16x1xf32>
    %23 = arith.mulf %21, %22 : vector<16x1xf32>
    %24 = tpu.iota {dimensions = array<i32: 1>} : vector<16x20xi32>
    %25 = vector.broadcast %5 : vector<16x1xi32> to vector<16x20xi32>
    %26 = arith.cmpi eq, %24, %25 : vector<16x20xi32>
    %cst_8 = arith.constant 0.000000e+00 : f32
    %27 = vector.broadcast %cst_8 : f32 to vector<16x20xf32>
    %28 = arith.select %26, %1, %27 : vector<16x20xi1>, vector<16x20xf32>
    %cst_9 = arith.constant dense<0.000000e+00> : vector<16xf32>
    %29 = vector.multi_reduction <add>, %28, %cst_9 [1] : vector<16x20xf32> to vector<16xf32>
    %30 = vector.shape_cast %29 : vector<16xf32> to vector<16x1xf32>
    %31 = math.log %30 : vector<16x1xf32>
    %cst_10 = arith.constant 0.000000e+00 : f32
    %32 = vector.broadcast %cst_10 : f32 to vector<16x1xf32>
    %33 = arith.subf %32, %31 : vector<16x1xf32>
    %34 = arith.mulf %2, %33 : vector<16x1xf32>
    %35 = arith.addf %23, %34 : vector<16x1xf32>
    %36 = vector.shape_cast %35 : vector<16x1xf32> to vector<1x16x1xf32>
    %cst_11 = arith.constant dense<0.000000e+00> : vector<1xf32>
    %37 = vector.multi_reduction <add>, %36, %cst_11 [1, 2] : vector<1x16x1xf32> to vector<1xf32>
    %38 = vector.shape_cast %37 : vector<1xf32> to vector<1x1x1xf32>
    %39 = vector.extract %38[0, 0, 0] : f32 from vector<1x1x1xf32>
    %cst_12 = arith.constant 6.250000e-02 : f32
    %40 = arith.mulf %39, %cst_12 : f32
    %c0_13 = arith.constant 0 : index
    %c0_14 = arith.constant 0 : index
    %41 = memref.load %arg2[%c0_13, %c0_14] : memref<1x1xf32, #tpu.memory_space<smem>>
    memref.store %40, %arg2[%c0_13, %c0_14] : memref<1x1xf32, #tpu.memory_space<smem>>
    return
  }
}

</mosaic_0001>

<llo_original>
// kernel: loss_2_pallas.1
$region0: #{loss_2_pallas.1}
  #allocation0 [shape = 'u32[]', space=smem, size = 0x4, offset = 0x4, fixed_abs, tag = 'smem constant byte address 0x4 - core index']
  #allocation1 [shape = 'u32[72,128]{1,0:T(1,128)}', space=vmem, size = 0x9000, scoped, tag = 'internal scratch']
  %s0 = inlined_call_operand.vmem [shape: f32[16,3], index: 0, kind: input, shape index: {}]
  %s1 = inlined_call_operand.vmem [shape: f32[16,20], index: 1, kind: input, shape index: {}]
  %s2 = inlined_call_operand.hbm [shape: f32[1,1], index: 2, kind: output, shape index: {}]
  %s3 = sld [smem:[#allocation0]]
  $region18: #{loss_2_pallas.1} parent=0
    _
  %s5 = ssub.s32 1, %s3
  %s6 = scalar_select 0, %s5, %s3
  $region1: #{loss_2_pallas.1} parent=0
    #allocation2 [shape = 'u8[512]{0}', space=smem, size = 0x200, scoped, tag = 'output window, operand 0, single buffered']
    #allocation3 [shape = 's32[1]{0}', space=sflag, size = 0x4, scoped, tag = 'scoped memory for loss_2_pallas.1']
    %7 = vsyncpa [#allocation3], 0
    // Predicated region
    $region2: #{loss_2_pallas.1} parent=1 // pred_check
      _
    $region3: #{loss_2_pallas.1} parent=1 // pred_check_branch
      %9 = sbr.rel (0) target = $region5
    $region4: #{loss_2_pallas.1} parent=1 // pred_region
      _
    $region5: #{loss_2_pallas.1} parent=1 // pred_fallthru
      _
    // Predicated region
    $region6: #{loss_2_pallas.1} parent=1 // pred_check
      _
    $region7: #{loss_2_pallas.1} parent=1 // pred_check_branch
      %11 = sbr.rel (0) target = $region9
    $region8: #{loss_2_pallas.1} parent=1 // pred_region
      _
    $region9: #{loss_2_pallas.1} parent=1 // pred_fallthru
      _
    %v12 = vld [vmem:[%s0] sm:$0xff]
    %v13 = vld [vmem:[%s0 + $0x8] sm:$0xff]
    %v14 = vld [vmem:[%s1] sm:$0xff]
    %v15 = vld [vmem:[%s1 + $0x8] sm:$0xff]
    %v16 = vcvt.f32.s32.to.zero.pseudo %v12
    %v17 = vcvt.f32.s32.to.zero.pseudo %v13
    %20 = vrot.lane.b32.xlu0 %v12, 127
    %v21 = vpop.permute.xlu0 %20
    %22 = vrot.lane.b32.xlu0 %v13, 127
    %v23 = vpop.permute.xlu0 %22
    %v26 = vmul.f32 %v12, %v21
    %v27 = vmul.f32 %v13, %v23
    %v28 = vsub.f32 1.0, %v12
    %v29 = vsub.f32 1.0, %v13
    %32 = vrot.lane.b32.xlu0 %v28, 127
    %v33 = vpop.permute.xlu0 %32
    %34 = vrot.lane.b32.xlu0 %v29, 127
    %v35 = vpop.permute.xlu0 %34
    %v38 = vmul.f32 %v28, %v33
    %v39 = vmul.f32 %v29, %v35
    %v40 = vadd.f32 %v26, %v38
    %v41 = vadd.f32 %v27, %v39
    %v42 = vmul.f32 %v12, 19.05
    %v43 = vmul.f32 %v13, 19.05
    %v44 = vmul.f32 %v28, 0.51
    %v45 = vmul.f32 %v29, 0.51
    %v46 = vadd.f32 %v42, %v44
    %v47 = vadd.f32 %v43, %v45
    %v48 = vsub.f32 0.0, %v46
    %v49 = vsub.f32 0.0, %v47
    %v50 = vlog2.pop %v40
    %v51 = vmul.f32 %v50, 0.6931472
    %v52 = vlog2.pop %v41
    %v53 = vmul.f32 %v52, 0.6931472
    %v54 = vmul.f32 %v48, %v51
    %v55 = vmul.f32 %v49, %v53
    %v56 = vlaneseq
    %v57 = vand.u32 %v56, 127
    %58 = vset.pattern.permute.xlu0 2
    %59 = vperm.xlu0 %58, %v16
    %v60 = vpop.permute.xlu0 %59
    %61 = vset.pattern.permute.xlu0 2
    %62 = vperm.xlu0 %61, %v17
    %v63 = vpop.permute.xlu0 %62
    %vm64 = vcmp.eq.s32.totalorder %v57, %v60
    %vm65 = vcmp.eq.s32.totalorder %v57, %v63
    %v66 = vsel %vm64, %v14, 0.0
    %v67 = vsel %vm65, %v15, 0.0
    %vm68 = vcmask 162816
    %v69 = vsel %vm68, %v66, 0.0
    %70 = vadd.xlane.f32.xlu0 %v69
    %v71 = vpop.xlane.xlu0 %70
    %v72 = vsel %vm68, %v67, 0.0
    %73 = vadd.xlane.f32.xlu0 %v72
    %v74 = vpop.xlane.xlu0 %73
    %v75 = vlog2.pop %v71
    %v76 = vmul.f32 %v75, 0.6931472
    %v77 = vlog2.pop %v74
    %v78 = vmul.f32 %v77, 0.6931472
    %v79 = vsub.f32 0.0, %v76
    %v80 = vsub.f32 0.0, %v78
    %v81 = vmul.f32 %v12, %v79
    %v82 = vmul.f32 %v13, %v80
    %v83 = vadd.f32 %v54, %v81
    %v84 = vadd.f32 %v55, %v82
    %vm85 = vcmask 7168
    %v86 = vsel %vm85, %v83, 0.0
    %v87 = vsel %vm85, %v84, 0.0
    %v88 = vadd.f32 %v86, %v87
    %89 = vadd.xlane.f32.xlu0 %v88
    %v90 = vpop.xlane.xlu0 %89
    %v91 = vrot.slane %v90, 4
    %v92 = vadd.f32 %v90, %v91
    %v93 = vrot.slane %v92, 2
    %v94 = vadd.f32 %v92, %v93
    %v95 = vrot.slane %v94, 1
    %v96 = vadd.f32 %v94, %v95
    %s97 = vtos %v96
    %s98 = smul.f32 %s97, 0.0625
    %s99 = scalar_lea.smem [#allocation2], 0
    %100 = sst [smem:[%s99]] %s98
    // Predicated region
    $region10: #{loss_2_pallas.1} parent=1 // pred_check
      _
    $region11: #{loss_2_pallas.1} parent=1 // pred_check_branch
      %102 = sbr.rel (0) target = $region13
    $region12: #{loss_2_pallas.1} parent=1 // pred_region
      %104 = vsyncadd [#allocation3], 0
      %s106 = sshll.u32 %s2, 4
      %s107 = int_to_ptr.hbm [resolvable:$true] %s106
      %109 = dma.smem_to_hbm [#allocation2], 16, %s107, [#allocation3]
    $region13: #{loss_2_pallas.1} parent=1 // pred_fallthru
      _
    // Predicated region
    $region14: #{loss_2_pallas.1} parent=1 // pred_check
      _
    $region15: #{loss_2_pallas.1} parent=1 // pred_check_branch
      %111 = sbr.rel (0) target = $region17
    $region16: #{loss_2_pallas.1} parent=1 // pred_region
      %113 = dma.done [#allocation3], 16
    $region17: #{loss_2_pallas.1} parent=1 // pred_fallthru
      _
    %114 = sfence
    %115 = vsyncpa [#allocation3], 1

</llo_original>
